<compile_context>
chip_gen: v6e
topology: v6e:2x2x1
jax: 0.10.0
libtpu: 0.0.40
codegen_flags: <defaults>
</compile_context>

<pallas_src>
import functools

import jax
import jax.numpy as jnp
from jax.experimental import pallas as pl
from jax.experimental.pallas import tpu as pltpu


def _round_up(x, m):
    return (x + m - 1) // m * m


# -----------------------------------------------------------------------------
# Kernel 1: one LightGCN propagation layer
#   next    = graph @ cur                        (bf16 MXU, f32 accumulate)
#   acc_out = acc_in + alpha * next              (fused, f32)
# -----------------------------------------------------------------------------
def _propagate_layer_kernel(g_ref, cur_ref, acc_in_ref, next_ref, acc_out_ref,
                            mm_ref, *, alpha):
    k = pl.program_id(1)

    @pl.when(k == 0)
    def _():
        mm_ref[...] = jnp.zeros_like(mm_ref)

    # bf16 x bf16 -> f32 accumulation on the MXU.
    mm_ref[...] += jnp.dot(g_ref[...], cur_ref[...],
                           preferred_element_type=jnp.float32)

    @pl.when(k == pl.num_programs(1) - 1)
    def _():
        nxt = mm_ref[...]
        next_ref[...] = nxt.astype(next_ref.dtype)            # bf16 for next layer
        acc_out_ref[...] = acc_in_ref[...] + alpha * nxt      # f32 running sum


def _propagate_layer(g, cur, acc, alpha, *, tm, tk):
    n_pad, d_pad = cur.shape
    grid = (n_pad // tm, n_pad // tk)
    return pl.pallas_call(
        functools.partial(_propagate_layer_kernel, alpha=float(alpha)),
        out_shape=(
            jax.ShapeDtypeStruct((n_pad, d_pad), jnp.bfloat16),   # next (bf16)
            jax.ShapeDtypeStruct((n_pad, d_pad), jnp.float32),    # acc  (f32)
        ),
        grid=grid,
        in_specs=[
            pl.BlockSpec((tm, tk), lambda i, k: (i, k)),          # graph tile
            pl.BlockSpec((tk, d_pad), lambda i, k: (k, 0)),       # cur K-slice
            pl.BlockSpec((tm, d_pad), lambda i, k: (i, 0)),       # acc_in row tile
        ],
        out_specs=[
            pl.BlockSpec((tm, d_pad), lambda i, k: (i, 0)),
            pl.BlockSpec((tm, d_pad), lambda i, k: (i, 0)),
        ],
        scratch_shapes=[pltpu.VMEM((tm, d_pad), jnp.float32)],
        compiler_params=pltpu.CompilerParams(
            dimension_semantics=("parallel", "arbitrary")),
    )(g, cur, acc)


def lightgcn_propagate(graph, emb0, alpha_k, *, tm=256, tk=256):
    """sum_k alpha_k * graph^k @ emb0, tiled per layer."""
    N, D = emb0.shape
    assert graph.shape == (N, N)
    n_pad = _round_up(N, max(tm, tk))
    d_pad = _round_up(D, 128)                       # lane-dense hidden dim

    g = jnp.pad(graph.astype(jnp.bfloat16),
                ((0, n_pad - N), (0, n_pad - N)))
    emb = jnp.pad(emb0.astype(jnp.float32),
                  ((0, n_pad - N), (0, d_pad - D)))

    acc = alpha_k[0] * emb                          # layer-0 term (cheap glue)
    cur = emb.astype(jnp.bfloat16)                  # bf16 MXU/stream format
    for layer in range(1, len(alpha_k)):
        cur, acc = _propagate_layer(g, cur, acc, alpha_k[layer], tm=tm, tk=tk)
    return acc[:N, :D]


# -----------------------------------------------------------------------------
# Kernel 2: forward scoring  sigmoid(sum_d u[d,b] * i[d,b])  — lane-dense (1, B)
# -----------------------------------------------------------------------------
def _score_kernel(u_ref, i_ref, out_ref):
    prod = u_ref[...] * i_ref[...]                       # (d_pad, TB) f32 on VPU
    gamma = jnp.sum(prod, axis=0, keepdims=True)         # (1, TB), B stays on lanes
    out_ref[...] = jax.nn.sigmoid(gamma).astype(out_ref.dtype)


def lightgcn_score(user_emb, item_emb, *, tb=128):
    B, D = user_emb.shape
    b_pad = _round_up(B, tb)
    d_pad = _round_up(D, 8)

    # Transpose so the batch sits on lanes: output (1, B) is unmasked / lane-dense.
    u = jnp.pad(user_emb.astype(jnp.float32), ((0, b_pad - B), (0, d_pad - D))).T
    it = jnp.pad(item_emb.astype(jnp.float32), ((0, b_pad - B), (0, d_pad - D))).T

    out = pl.pallas_call(
        _score_kernel,
        out_shape=jax.ShapeDtypeStruct((1, b_pad), jnp.float32),
        grid=(b_pad // tb,),
        in_specs=[
            pl.BlockSpec((d_pad, tb), lambda b: (0, b)),
            pl.BlockSpec((d_pad, tb), lambda b: (0, b)),
        ],
        out_specs=pl.BlockSpec((1, tb), lambda b: (0, b)),
        compiler_params=pltpu.CompilerParams(dimension_semantics=("parallel",)),
    )(u, it)
    return out[0, :B]


# -----------------------------------------------------------------------------
# Forward wrapper (matches LightGCN.forward semantics)
# -----------------------------------------------------------------------------
def lightgcn_forward(params, user_idx, item_idx):
    user_w = params["user_embedding"]    # [U, D]
    item_w = params["item_embedding"]    # [I, D]
    graph = params["graph"]              # [U+I, U+I] dense normalized adjacency
    alpha_k = params["alpha_k"]          # python list, len == n_layers + 1

    emb0 = jnp.concatenate([user_w, item_w], axis=0)              # torch.cat
    sum_emb = lightgcn_propagate(graph, emb0, alpha_k)            # convolution
    user_num = user_w.shape[0]
    all_user_embedding = sum_emb[:user_num]                       # torch.split
    all_item_embedding = sum_emb[user_num:]

    # Row gather (fancy indexing) — plain JAX glue.
    # TODO(synk): optionally fuse the gather into the score kernel with
    # PrefetchScalarGridSpec(num_scalar_prefetch=2) + pl.Element row lookups.
    u_emb = jnp.take(all_user_embedding, user_idx, axis=0)
    i_emb = jnp.take(all_item_embedding, item_idx, axis=0)
    return lightgcn_score(u_emb, i_emb)                           # sigmoid(sum(mul))


# -----------------------------------------------------------------------------
# Deterministic synthetic setup + reference check
# -----------------------------------------------------------------------------
def build_params(key, user_num, item_num, hidden_dim, n_layers):
    k_u, k_i, k_g = jax.random.split(key, 3)
    # nn.init.normal_(std=0.1)
    user_embedding = 0.1 * jax.random.normal(k_u, (user_num, hidden_dim), jnp.float32)
    item_embedding = 0.1 * jax.random.normal(k_i, (item_num, hidden_dim), jnp.float32)

    # Synthetic bipartite interaction matrix R, then symmetric normalized adjacency
    # A_hat = D^{-1/2} [[0, R], [R^T, 0]] D^{-1/2}  (the usual LightGCN norm_adj_matrix).
    R = (jax.random.uniform(k_g, (user_num, item_num)) < 0.15).astype(jnp.float32)
    N = user_num + item_num
    A = jnp.zeros((N, N), jnp.float32)
    A = A.at[:user_num, user_num:].set(R)
    A = A.at[user_num:, :user_num].set(R.T)
    deg = jnp.maximum(A.sum(axis=1), 1.0)
    d_inv_sqrt = 1.0 / jnp.sqrt(deg)
    graph = A * d_inv_sqrt[:, None] * d_inv_sqrt[None, :]

    # n_layers=2 in the torch ctor becomes self.n_layers = 3 propagation terms.
    total_layers = n_layers + 1
    alpha_k = [1.0 / total_layers] * total_layers

    return {
        "user_embedding": user_embedding,
        "item_embedding": item_embedding,
        "graph": graph,
        "alpha_k": alpha_k,
    }


def reference_forward(params, user_idx, item_idx):
    """Mirrors the kernel's bf16 MXU-input / f32-accumulate numerics."""
    emb = jnp.concatenate([params["user_embedding"], params["item_embedding"]],
                          axis=0).astype(jnp.float32)
    g = params["graph"].astype(jnp.bfloat16).astype(jnp.float32)
    acc = params["alpha_k"][0] * emb
    cur = emb.astype(jnp.bfloat16)
    for layer in range(1, len(params["alpha_k"])):
        nxt = g @ cur.astype(jnp.float32)
        acc = acc + params["alpha_k"][layer] * nxt
        cur = nxt.astype(jnp.bfloat16)
    user_num = params["user_embedding"].shape[0]
    u = acc[:user_num][user_idx]
    it = acc[user_num:][item_idx]
    return jax.nn.sigmoid(jnp.sum(u * it, axis=1))


if __name__ == "__main__":
    key = jax.random.PRNGKey(0)
    k_params, k_user, k_item = jax.random.split(key, 3)

    user_num, item_num = 200, 312        # N = 512 graph nodes -> 2x2 tile grid
    hidden_dim = 64                      # padded to 128 lanes internally
    n_layers = 2                         # -> 3 propagation terms
    batch = 8

    params = build_params(k_params, user_num, item_num, hidden_dim, n_layers)
    user_idx = jax.random.randint(k_user, (batch,), 0, user_num)
    item_idx = jax.random.randint(k_item, (batch,), 0, item_num)

    out = lightgcn_forward(params, user_idx, item_idx)
    out = jax.block_until_ready(out)

    ref = reference_forward(params, user_idx, item_idx)
    assert out.shape == (batch,)
    assert jnp.allclose(out, ref, atol=2e-3, rtol=2e-3), (out, ref)

    print("KERNEL_OK")
</pallas_src>

<mosaic_0001>
module attributes {stable_mosaic.version = 11 : i64} {
  func.func @_propagate_layer_kernel(%arg0: i32, %arg1: i32, %arg2: memref<256x256xbf16, #tpu.memory_space<vmem>>, %arg3: memref<256x128xbf16, #tpu.memory_space<vmem>>, %arg4: memref<256x128xf32, #tpu.memory_space<vmem>>, %arg5: memref<256x128xbf16, #tpu.memory_space<vmem>>, %arg6: memref<256x128xf32, #tpu.memory_space<vmem>>, %arg7: memref<256x128xf32, #tpu.memory_space<vmem>>) attributes {dimension_semantics = [#tpu.dimension_semantics<parallel>, #tpu.dimension_semantics<arbitrary>], iteration_bounds = array<i64: 2, 2>, scalar_prefetch = 0 : i64, scratch_operands = 1 : i64, tpu.core_type = #tpu.core_type<tc>, window_params = [{transform_indices = @transform_0, window_bounds = array<i64: 256, 256>}, {transform_indices = @transform_1, window_bounds = array<i64: 256, 128>}, {transform_indices = @transform_2, window_bounds = array<i64: 256, 128>}, {transform_indices = @transform_3, window_bounds = array<i64: 256, 128>}, {transform_indices = @transform_4, window_bounds = array<i64: 256, 128>}]} {
    %c0_i32 = arith.constant 0 : i32
    %0 = arith.cmpi eq, %arg1, %c0_i32 : i32
    %1 = arith.extui %0 : i1 to i32
    %c0_i32_0 = arith.constant 0 : i32
    %2 = arith.cmpi ne, %1, %c0_i32_0 : i32
    scf.if %2 {
      %cst_9 = arith.constant 0.000000e+00 : f32
      %12 = vector.broadcast %cst_9 : f32 to vector<256x128xf32>
      %c0_10 = arith.constant 0 : index
      %c0_11 = arith.constant 0 : index
      %13 = vector.load %arg7[%c0_10, %c0_11] : memref<256x128xf32, #tpu.memory_space<vmem>>, vector<256x128xf32>
      tpu.vector_store %arg7[%c0_10, %c0_11], %12 {strides = array<i32>} : memref<256x128xf32, #tpu.memory_space<vmem>>, vector<256x128xf32>,
    } else {
    }
    %c0 = arith.constant 0 : index
    %c0_1 = arith.constant 0 : index
    %3 = vector.load %arg7[%c0, %c0_1] : memref<256x128xf32, #tpu.memory_space<vmem>>, vector<256x128xf32>
    %c0_2 = arith.constant 0 : index
    %c0_3 = arith.constant 0 : index
    %4 = vector.load %arg2[%c0_2, %c0_3] : memref<256x256xbf16, #tpu.memory_space<vmem>>, vector<256x256xbf16>
    %c0_4 = arith.constant 0 : index
    %c0_5 = arith.constant 0 : index
    %5 = vector.load %arg3[%c0_4, %c0_5] : memref<256x128xbf16, #tpu.memory_space<vmem>>, vector<256x128xbf16>
    %cst = arith.constant dense<0.000000e+00> : vector<256x128xf32>
    %6 = tpu.matmul %4, %5, %cst {dimension_numbers = #tpu.dot_dimension_numbers<[1], [0], [0], [1], [0, 0, 1, 1], [], []>} : vector<256x256xbf16>, vector<256x128xbf16>, vector<256x128xf32> -> vector<256x128xf32>
    %7 = arith.addf %3, %6 : vector<256x128xf32>
    %c0_6 = arith.constant 0 : index
    %c0_7 = arith.constant 0 : index
    %8 = vector.load %arg7[%c0_6, %c0_7] : memref<256x128xf32, #tpu.memory_space<vmem>>, vector<256x128xf32>
    tpu.vector_store %arg7[%c0_6, %c0_7], %7 {strides = array<i32>} : memref<256x128xf32, #tpu.memory_space<vmem>>, vector<256x128xf32>,
    %c1_i32 = arith.constant 1 : i32
    %9 = arith.cmpi eq, %arg1, %c1_i32 : i32
    %10 = arith.extui %9 : i1 to i32
    %c0_i32_8 = arith.constant 0 : i32
    %11 = arith.cmpi ne, %10, %c0_i32_8 : i32
    scf.if %11 {
      %c0_9 = arith.constant 0 : index
      %c0_10 = arith.constant 0 : index
      %12 = vector.load %arg7[%c0_9, %c0_10] : memref<256x128xf32, #tpu.memory_space<vmem>>, vector<256x128xf32>
      %13 = arith.truncf %12 : vector<256x128xf32> to vector<256x128xbf16>
      %c0_11 = arith.constant 0 : index
      %c0_12 = arith.constant 0 : index
      %14 = vector.load %arg5[%c0_11, %c0_12] : memref<256x128xbf16, #tpu.memory_space<vmem>>, vector<256x128xbf16>
      tpu.vector_store %arg5[%c0_11, %c0_12], %13 {strides = array<i32>} : memref<256x128xbf16, #tpu.memory_space<vmem>>, vector<256x128xbf16>,
      %c0_13 = arith.constant 0 : index
      %c0_14 = arith.constant 0 : index
      %15 = vector.load %arg4[%c0_13, %c0_14] : memref<256x128xf32, #tpu.memory_space<vmem>>, vector<256x128xf32>
      %cst_15 = arith.constant 0.333333343 : f32
      %16 = vector.broadcast %cst_15 : f32 to vector<256x128xf32>
      %17 = arith.mulf %16, %12 : vector<256x128xf32>
      %18 = arith.addf %15, %17 : vector<256x128xf32>
      %c0_16 = arith.constant 0 : index
      %c0_17 = arith.constant 0 : index
      %19 = vector.load %arg6[%c0_16, %c0_17] : memref<256x128xf32, #tpu.memory_space<vmem>>, vector<256x128xf32>
      tpu.vector_store %arg6[%c0_16, %c0_17], %18 {strides = array<i32>} : memref<256x128xf32, #tpu.memory_space<vmem>>, vector<256x128xf32>,
    } else {
    }
    return
  }
  func.func @transform_0(%arg0: i32, %arg1: i32) -> (i32, i32) {
    %c0_i32 = arith.constant 0 : i32
    return %arg0, %arg1 : i32, i32
  }
  func.func @transform_1(%arg0: i32, %arg1: i32) -> (i32, i32) {
    %c0_i32 = arith.constant 0 : i32
    %c0_i32_0 = arith.constant 0 : i32
    return %arg1, %c0_i32 : i32, i32
  }
  func.func @transform_2(%arg0: i32, %arg1: i32) -> (i32, i32) {
    %c0_i32 = arith.constant 0 : i32
    %c0_i32_0 = arith.constant 0 : i32
    return %arg0, %c0_i32 : i32, i32
  }
  func.func @transform_3(%arg0: i32, %arg1: i32) -> (i32, i32) {
    %c0_i32 = arith.constant 0 : i32
    %c0_i32_0 = arith.constant 0 : i32
    return %arg0, %c0_i32 : i32, i32
  }
  func.func @transform_4(%arg0: i32, %arg1: i32) -> (i32, i32) {
    %c0_i32 = arith.constant 0 : i32
    %c0_i32_0 = arith.constant 0 : i32
    return %arg0, %c0_i32 : i32, i32
  }
}

</mosaic_0001>

<llo_original>
// kernel: tpu_custom_call.1
$region0: #{tpu_custom_call.1}
  #allocation0 [shape = 'u32[]', space=smem, size = 0x4, offset = 0x4, fixed_abs, tag = 'smem constant byte address 0x4 - core index']
  #allocation1 [shape = 'u32[144,128]{1,0:T(1,128)}', space=vmem, size = 0x12000, scoped, tag = 'internal scratch']
  #allocation2 [shape = 'f32[256,128]{1,0:T(8,128)}', space=vmem, size = 0x20000, scoped, tag = 'scratch operand']
  %s0 = inlined_call_operand.hbm [shape: bf16[512,512], index: 0, kind: input, shape index: {}]
  %s1 = inlined_call_operand.hbm [shape: bf16[512,128], index: 1, kind: input, shape index: {}]
  %s2 = inlined_call_operand.hbm [shape: f32[512,128], index: 2, kind: input, shape index: {}]
  %s3 = inlined_call_operand.hbm [shape: bf16[512,128], index: 3, kind: output, shape index: {0}]
  %s4 = inlined_call_operand.hbm [shape: f32[512,128], index: 4, kind: output, shape index: {1}]
  %5 = xla_tuple %s3, %s4
  %s6 = sld [smem:[#allocation0]]
  $region73: #{tpu_custom_call.1} parent=0
    _
  %s8 = ssub.s32 1, %s6
  %s9 = scalar_select 0, %s8, %s6
  $region1: #{tpu_custom_call.1} parent=0
    #allocation3 [shape = 'u8[262144]{0}', space=vmem, size = 0x40000, scoped, tag = 'input window, operand 0']
    #allocation4 [shape = 's32[2]{0}', space=sflag, size = 0x8, scoped, tag = 'scoped memory for tpu_custom_call.1']
    #allocation5 [shape = 's32[2]{0}', space=sflag, size = 0x8, scoped, tag = 'scoped memory for tpu_custom_call.1']
    #allocation6 [shape = 'u8[131072]{0}', space=vmem, size = 0x20000, scoped, tag = 'input window, operand 1']
    #allocation7 [shape = 's32[2]{0}', space=sflag, size = 0x8, scoped, tag = 'scoped memory for tpu_custom_call.1']
    #allocation8 [shape = 'u8[262144]{0}', space=vmem, size = 0x40000, scoped, tag = 'input window, operand 2']
    #allocation9 [shape = 'u8[131072]{0}', space=vmem, size = 0x20000, scoped, tag = 'output window, operand 0']
    #allocation10 [shape = 'u8[262144]{0}', space=vmem, size = 0x40000, scoped, tag = 'output window, operand 1']
    #allocation11 [shape = 's32[2]{0}', space=sflag, size = 0x8, scoped, tag = 'scoped memory for tpu_custom_call.1']
    %10 = vsyncpa [#allocation4], 0
    %s11 = scalar_lea.sflag [#allocation4], 1
    %12 = vsyncpa %s11, 0
    %13 = vsyncpa [#allocation7], 0
    %s14 = scalar_lea.sflag [#allocation7], 1
    %15 = vsyncpa %s14, 0
    %16 = vsyncpa [#allocation5], 0
    %s17 = scalar_lea.sflag [#allocation5], 1
    %18 = vsyncpa %s17, 0
    %19 = vsyncpa [#allocation11], 0
    %s20 = scalar_lea.sflag [#allocation11], 1
    %21 = vsyncpa %s20, 0
    loop: start=0, step=1, limit=6
    $region2: #{tpu_custom_call.1} parent=1 // loop_pre_header
      _
    $region3: #{tpu_custom_call.1} parent=1 // loop_header
      %s23 = sphi 0, %s27
      %p24 = scmp.ge.s32.totalorder %s23, 6
      %s30 = sphi 0, %s42
      %s31 = sphi 0, %s38
      %s32 = sphi 0, %s30
      %s33 = sphi 0, %s31
      %s34 = sphi 0, %s32
      %s35 = sphi 0, %s33
      %s47 = sphi 0, %s49
      %s50 = sphi 0, %s47
      %s51 = sphi 0, %s50
      %s67 = sphi 0, %s51
      %s73 = sphi 0, %s75
      %s76 = sphi 0, %s73
      %s77 = sphi 0, %s76
      %s93 = sphi 0, %s77
      %s99 = sphi 0, %s101
      %s102 = sphi 0, %s99
      %s103 = sphi 0, %s102
      %s119 = sphi 0, %s103
      %s125 = sphi 0, %s127
      %s128 = sphi 0, %s125
      %s129 = sphi 0, %s128
      %s145 = sphi 0, %s129
      %s151 = sphi 0, %s153
      %s154 = sphi 0, %s151
      %s155 = sphi 0, %s154
      %s171 = sphi 0, %s155
    $region4: #{tpu_custom_call.1} parent=1 // loop_header_branch
      %26 = sbr.rel (%p24) target = $region8
    $region5: #{tpu_custom_call.1} parent=1 // loop_body
      %s28 = ssub.s32 %s23, 1
      %s29 = ssub.s32 %s23, 2
      %s36 = sadd.s32 1, %s31
      %p37 = scmp.ge.s32.totalorder %s36, 2
      %s38 = scalar_select %p37, 0, %s36
      %s39 = sadd.s32 1, %s30
      %s40 = scalar_select %p37, %s39, %s30
      %p41 = scmp.ge.s32.totalorder %s40, 2
      %s42 = scalar_select %p41, 0, %s40
      %s43 = ssub.s32 %s30, %s42
      %s44 = ssub.s32 %s31, %s38
      %s45 = sor.u32 %s43, %s44
      %p46 = scmp.eq.s32.totalorder %s45, 0
      %s48 = sadd.s32 %s47, 1
      %s49 = scalar_select %p46, %s47, %s48
      %p52 = pneg %p46
      %p53 = scmp.eq.s32.totalorder %s23, 3
      %p54 = por %p52, %p53
      %p55 = scmp.ne.s32.totalorder %s47, %s50
      %p56 = scmp.eq.s32.totalorder %s23, 0
      %p57 = por %p55, %p56
      %p58 = scmp.ne.s32.totalorder %s47, %s50
      %p59 = scmp.eq.s32.totalorder %s28, 3
      %p60 = por %p58, %p59
      %p61 = scmp.ne.s32.totalorder %s50, %s51
      %p62 = scmp.eq.s32.totalorder %s28, 0
      %p63 = por %p61, %p62
      %p64 = scmp.ne.s32.totalorder %s50, %s51
      %p65 = scmp.eq.s32.totalorder %s29, 3
      %p66 = por %p64, %p65
      %p68 = scmp.ne.s32.totalorder %s51, %s67
      %p69 = scmp.eq.s32.totalorder %s29, 0
      %p70 = por %p68, %p69
      %s71 = ssub.s32 %s31, %s38
      %p72 = scmp.eq.s32.totalorder %s71, 0
      %s74 = sadd.s32 %s73, 1
      %s75 = scalar_select %p72, %s73, %s74
      %p78 = pneg %p72
      %p79 = scmp.eq.s32.totalorder %s23, 3
      %p80 = por %p78, %p79
      %p81 = scmp.ne.s32.totalorder %s73, %s76
      %p82 = scmp.eq.s32.totalorder %s23, 0
      %p83 = por %p81, %p82
      %p84 = scmp.ne.s32.totalorder %s73, %s76
      %p85 = scmp.eq.s32.totalorder %s28, 3
      %p86 = por %p84, %p85
      %p87 = scmp.ne.s32.totalorder %s76, %s77
      %p88 = scmp.eq.s32.totalorder %s28, 0
      %p89 = por %p87, %p88
      %p90 = scmp.ne.s32.totalorder %s76, %s77
      %p91 = scmp.eq.s32.totalorder %s29, 3
      %p92 = por %p90, %p91
      %p94 = scmp.ne.s32.totalorder %s77, %s93
      %p95 = scmp.eq.s32.totalorder %s29, 0
      %p96 = por %p94, %p95
      %s97 = ssub.s32 %s30, %s42
      %p98 = scmp.eq.s32.totalorder %s97, 0
      %s100 = sadd.s32 %s99, 1
      %s101 = scalar_select %p98, %s99, %s100
      %p104 = pneg %p98
      %p105 = scmp.eq.s32.totalorder %s23, 3
      %p106 = por %p104, %p105
      %p107 = scmp.ne.s32.totalorder %s99, %s102
      %p108 = scmp.eq.s32.totalorder %s23, 0
      %p109 = por %p107, %p108
      %p110 = scmp.ne.s32.totalorder %s99, %s102
      %p111 = scmp.eq.s32.totalorder %s28, 3
      %p112 = por %p110, %p111
      %p113 = scmp.ne.s32.totalorder %s102, %s103
      %p114 = scmp.eq.s32.totalorder %s28, 0
      %p115 = por %p113, %p114
      %p116 = scmp.ne.s32.totalorder %s102, %s103
      %p117 = scmp.eq.s32.totalorder %s29, 3
      %p118 = por %p116, %p117
      %p120 = scmp.ne.s32.totalorder %s103, %s119
      %p121 = scmp.eq.s32.totalorder %s29, 0
      %p122 = por %p120, %p121
      %s123 = ssub.s32 %s30, %s42
      %p124 = scmp.eq.s32.totalorder %s123, 0
      %s126 = sadd.s32 %s125, 1
      %s127 = scalar_select %p124, %s125, %s126
      %p130 = pneg %p124
      %p131 = scmp.eq.s32.totalorder %s23, 3
      %p132 = por %p130, %p131
      %p133 = scmp.ne.s32.totalorder %s125, %s128
      %p134 = scmp.eq.s32.totalorder %s23, 0
      %p135 = por %p133, %p134
      %p136 = scmp.ne.s32.totalorder %s125, %s128
      %p137 = scmp.eq.s32.totalorder %s28, 3
      %p138 = por %p136, %p137
      %p139 = scmp.ne.s32.totalorder %s128, %s129
      %p140 = scmp.eq.s32.totalorder %s28, 0
      %p141 = por %p139, %p140
      %p142 = scmp.ne.s32.totalorder %s128, %s129
      %p143 = scmp.eq.s32.totalorder %s29, 3
      %p144 = por %p142, %p143
      %p146 = scmp.ne.s32.totalorder %s129, %s145
      %p147 = scmp.eq.s32.totalorder %s29, 0
      %p148 = por %p146, %p147
      %s149 = ssub.s32 %s30, %s42
      %p150 = scmp.eq.s32.totalorder %s149, 0
      %s152 = sadd.s32 %s151, 1
      %s153 = scalar_select %p150, %s151, %s152
      %p156 = pneg %p150
      %p157 = scmp.eq.s32.totalorder %s23, 3
      %p158 = por %p156, %p157
      %p159 = scmp.ne.s32.totalorder %s151, %s154
      %p160 = scmp.eq.s32.totalorder %s23, 0
      %p161 = por %p159, %p160
      %p162 = scmp.ne.s32.totalorder %s151, %s154
      %p163 = scmp.eq.s32.totalorder %s28, 3
      %p164 = por %p162, %p163
      %p165 = scmp.ne.s32.totalorder %s154, %s155
      %p166 = scmp.eq.s32.totalorder %s28, 0
      %p167 = por %p165, %p166
      %p168 = scmp.ne.s32.totalorder %s154, %s155
      %p169 = scmp.eq.s32.totalorder %s29, 3
      %p170 = por %p168, %p169
      %p172 = scmp.ne.s32.totalorder %s155, %s171
      %p173 = scmp.eq.s32.totalorder %s29, 0
      %p174 = por %p172, %p173
      %p175 = scmp.le.s32.totalorder 1, %s23
      %p176 = scmp.lt.s32.totalorder %s23, 5
      %p177 = pnand %p175, %p176
      %p178 = pneg %p177
      // Predicated region
      $region9: #{tpu_custom_call.1} parent=5 // pred_check
        _
      $region10: #{tpu_custom_call.1} parent=5 // pred_check_branch
        %180 = sbr.rel (%p177) target = $region12
      $region11: #{tpu_custom_call.1} parent=5 // pred_region
        %s181 = ssub.s32 %s23, 1
      $region12: #{tpu_custom_call.1} parent=5 // pred_fallthru
        _
      %p182 = scmp.lt.s32.totalorder %s23, 4
      // Predicated region
      $region13: #{tpu_custom_call.1} parent=5 // pred_check
        %p183 = pneg %p182
      $region14: #{tpu_custom_call.1} parent=5 // pred_check_branch
        %185 = sbr.rel (%p183) target = $region16
      $region15: #{tpu_custom_call.1} parent=5 // pred_region
        // Predicated region
        $region17: #{tpu_custom_call.1} parent=15 // pred_check
          %p186 = pneg %p57
        $region18: #{tpu_custom_call.1} parent=15 // pred_check_branch
          %188 = sbr.rel (%p186) target = $region20
        $region19: #{tpu_custom_call.1} parent=15 // pred_region
          %s189 = sand.u32 %s47, 1
          %s190 = scalar_lea.sflag [#allocation4], %s189
          %s191 = sand.u32 %s47, 1
          %s192 = smul.addr %s191, 256
          %s193 = scalar_lea.vmem [#allocation3], %s192
          %s194 = smul.u32 32, %s30
          %s195 = smul.u32 2, %s31
          %s197 = ssub.s32 4096, 4096
          %198 = vsyncadd %s190, %s197
          %s199 = smul.addr %s194, 4
          %s200 = sadd.s32 %s195, %s199
          %s201 = smul.addr %s200, 64
          %s202 = scalar_lea.hbm %s0, %s201
          %s203 = sshll.u32 %s193, 4
          %s204 = int_to_ptr.vmem [resolvable:$true] %s203
          %209 = dma.hbm_to_vmem [thread:$0]  %s202, 4096, %s204, %s190, 256, 128, 8
        $region20: #{tpu_custom_call.1} parent=15 // pred_fallthru
          _
        // Predicated region
        $region21: #{tpu_custom_call.1} parent=15 // pred_check
          %p210 = pneg %p83
        $region22: #{tpu_custom_call.1} parent=15 // pred_check_branch
          %212 = sbr.rel (%p210) target = $region24
        $region23: #{tpu_custom_call.1} parent=15 // pred_region
          %s213 = sand.u32 %s23, 1
          %s214 = scalar_lea.sflag [#allocation7], %s213
          %s215 = sand.u32 %s73, 1
          %s216 = smul.addr %s215, 128
          %s217 = scalar_lea.vmem [#allocation6], %s216
          %s218 = smul.u32 32, %s31
          %s220 = ssub.s32 2048, 2048
          %221 = vsyncadd %s214, %s220
          %s222 = smul.addr %s218, 64
          %s223 = scalar_lea.hbm %s1, %s222
          %s224 = sshll.u32 %s217, 4
          %s225 = int_to_ptr.vmem [resolvable:$true] %s224
          %230 = dma.hbm_to_vmem [thread:$0]  %s223, 2048, %s225, %s214, 64, 64, 4
        $region24: #{tpu_custom_call.1} parent=15 // pred_fallthru
          _
        // Predicated region
        $region25: #{tpu_custom_call.1} parent=15 // pred_check
          %p231 = pneg %p109
        $region26: #{tpu_custom_call.1} parent=15 // pred_check_branch
          %233 = sbr.rel (%p231) target = $region28
        $region27: #{tpu_custom_call.1} parent=15 // pred_region
          %s234 = sand.u32 %s23, 1
          %s235 = scalar_lea.sflag [#allocation7], %s234
          %s236 = sand.u32 %s99, 1
          %s237 = smul.addr %s236, 256
          %s238 = scalar_lea.vmem [#allocation8], %s237
          %s239 = smul.u32 32, %s30
          %s241 = ssub.s32 4096, 4096
          %242 = vsyncadd %s235, %s241
          %s243 = smul.addr %s239, 128
          %s244 = scalar_lea.hbm %s2, %s243
          %s245 = sshll.u32 %s238, 4
          %s246 = int_to_ptr.vmem [resolvable:$true] %s245
          %251 = dma.hbm_to_vmem [thread:$0]  %s244, 4096, %s246, %s235, 128, 128, 8
        $region28: #{tpu_custom_call.1} parent=15 // pred_fallthru
          _
      $region16: #{tpu_custom_call.1} parent=5 // pred_fallthru
        _
      %p252 = scmp.le.s32.totalorder 1, %s23
      %p253 = scmp.lt.s32.totalorder %s23, 5
      %p254 = pnand %p252, %p253
      %p255 = pneg %p254
      // Predicated region
      $region29: #{tpu_custom_call.1} parent=5 // pred_check
        _
      $region30: #{tpu_custom_call.1} parent=5 // pred_check_branch
        %257 = sbr.rel (%p254) target = $region32
      $region31: #{tpu_custom_call.1} parent=5 // pred_region
        %s258 = ssub.s32 %s23, 1
        %s259 = sand.u32 %s50, 1
        %s260 = scalar_lea.sflag [#allocation4], %s259
        %s261 = sand.u32 %s50, 1
        %s262 = smul.addr %s261, 256
        %s263 = scalar_lea.vmem [#allocation3], %s262
        // Predicated region
        $region33: #{tpu_custom_call.1} parent=31 // pred_check
          %p264 = pneg %p63
        $region34: #{tpu_custom_call.1} parent=31 // pred_check_branch
          %266 = sbr.rel (%p264) target = $region36
        $region35: #{tpu_custom_call.1} parent=31 // pred_region
          %267 = dma.done %s260, 4096
        $region36: #{tpu_custom_call.1} parent=31 // pred_fallthru
          _
        %s268 = sand.u32 %s28, 1
        %s269 = scalar_lea.sflag [#allocation7], %s268
        %s270 = sand.u32 %s76, 1
        %s271 = smul.addr %s270, 128
        %s272 = scalar_lea.vmem [#allocation6], %s271
        // Predicated region
        $region37: #{tpu_custom_call.1} parent=31 // pred_check
          %p273 = pneg %p89
        $region38: #{tpu_custom_call.1} parent=31 // pred_check_branch
          %275 = sbr.rel (%p273) target = $region40
        $region39: #{tpu_custom_call.1} parent=31 // pred_region
          %276 = dma.done %s269, 2048
        $region40: #{tpu_custom_call.1} parent=31 // pred_fallthru
          _
        %s277 = sand.u32 %s28, 1
        %s278 = scalar_lea.sflag [#allocation7], %s277
        %s279 = sand.u32 %s102, 1
        %s280 = smul.addr %s279, 256
        %s281 = scalar_lea.vmem [#allocation8], %s280
        // Predicated region
        $region41: #{tpu_custom_call.1} parent=31 // pred_check
          %p282 = pneg %p115
        $region42: #{tpu_custom_call.1} parent=31 // pred_check_branch
          %284 = sbr.rel (%p282) target = $region44
        $region43: #{tpu_custom_call.1} parent=31 // pred_region
          %285 = dma.done %s278, 4096
        $region44: #{tpu_custom_call.1} parent=31 // pred_fallthru
          _
        %s286 = sand.u32 %s50, 1
        %s287 = scalar_lea.sflag [#allocation4], %s286
        %s288 = sand.u32 %s50, 1
        %s289 = smul.addr %s288, 256
        %s290 = scalar_lea.vmem [#allocation3], %s289
        %p291 = pneg %p63
        %p292 = pneg %p60
        %s293 = sand.u32 %s28, 1
        %s294 = scalar_lea.sflag [#allocation7], %s293
        %s295 = sand.u32 %s76, 1
        %s296 = smul.addr %s295, 128
        %s297 = scalar_lea.vmem [#allocation6], %s296
        %p298 = pneg %p89
        %p299 = pneg %p86
        %s300 = sand.u32 %s28, 1
        %s301 = scalar_lea.sflag [#allocation7], %s300
        %s302 = sand.u32 %s102, 1
        %s303 = smul.addr %s302, 256
        %s304 = scalar_lea.vmem [#allocation8], %s303
        %p305 = pneg %p115
        %p306 = pneg %p112
        %p307 = pneg %p141
        %p308 = pneg %p138
        %s309 = sand.u32 %s128, 1
        %s310 = scalar_lea.sflag [#allocation5], %s309
        %s311 = sand.u32 %s128, 1
        %s312 = smul.addr %s311, 128
        %s313 = scalar_lea.vmem [#allocation9], %s312
        %p314 = pneg %p167
        %p315 = pneg %p164
        %s316 = sand.u32 %s154, 1
        %s317 = scalar_lea.sflag [#allocation11], %s316
        %s318 = sand.u32 %s154, 1
        %s319 = smul.addr %s318, 256
        %s320 = scalar_lea.vmem [#allocation10], %s319
        %s321 = smul.u32 32, %s32
        %s322 = smul.u32 2, %s33
        %s323 = smul.u32 32, %s33
        %s324 = smul.u32 32, %s32
        %s325 = smul.u32 32, %s32
        %s326 = smul.u32 32, %s32
        %p328 = scmp.eq.s32.totalorder %s33, 0
        // Predicated region
        $region45: #{tpu_custom_call.1} parent=31 // pred_check
          %p329 = pneg %p328
        $region46: #{tpu_custom_call.1} parent=31 // pred_check_branch
          %331 = sbr.rel (%p329) target = $region48
        $region47: #{tpu_custom_call.1} parent=31 // pred_region
          %332 = vst [vmem:[#allocation2] sm:$0xff] 0.0
          %333 = vst [vmem:[#allocation2 + $0x8] sm:$0xff] 0.0
          %334 = vst [vmem:[#allocation2 + $0x10] sm:$0xff] 0.0
          %335 = vst [vmem:[#allocation2 + $0x18] sm:$0xff] 0.0
          %336 = vst [vmem:[#allocation2 + $0x20] sm:$0xff] 0.0
          %337 = vst [vmem:[#allocation2 + $0x28] sm:$0xff] 0.0
          %338 = vst [vmem:[#allocation2 + $0x30] sm:$0xff] 0.0
          %339 = vst [vmem:[#allocation2 + $0x38] sm:$0xff] 0.0
          %340 = vst [vmem:[#allocation2 + $0x40] sm:$0xff] 0.0
          %341 = vst [vmem:[#allocation2 + $0x48] sm:$0xff] 0.0
          %342 = vst [vmem:[#allocation2 + $0x50] sm:$0xff] 0.0
          %343 = vst [vmem:[#allocation2 + $0x58] sm:$0xff] 0.0
          %344 = vst [vmem:[#allocation2 + $0x60] sm:$0xff] 0.0
          %345 = vst [vmem:[#allocation2 + $0x68] sm:$0xff] 0.0
          %346 = vst [vmem:[#allocation2 + $0x70] sm:$0xff] 0.0
          %347 = vst [vmem:[#allocation2 + $0x78] sm:$0xff] 0.0
          %348 = vst [vmem:[#allocation2 + $0x80] sm:$0xff] 0.0
          %349 = vst [vmem:[#allocation2 + $0x88] sm:$0xff] 0.0
          %350 = vst [vmem:[#allocation2 + $0x90] sm:$0xff] 0.0
          %351 = vst [vmem:[#allocation2 + $0x98] sm:$0xff] 0.0
          %352 = vst [vmem:[#allocation2 + $0xa0] sm:$0xff] 0.0
          %353 = vst [vmem:[#allocation2 + $0xa8] sm:$0xff] 0.0
          %354 = vst [vmem:[#allocation2 + $0xb0] sm:$0xff] 0.0
          %355 = vst [vmem:[#allocation2 + $0xb8] sm:$0xff] 0.0
          %356 = vst [vmem:[#allocation2 + $0xc0] sm:$0xff] 0.0
          %357 = vst [vmem:[#allocation2 + $0xc8] sm:$0xff] 0.0
          %358 = vst [vmem:[#allocation2 + $0xd0] sm:$0xff] 0.0
          %359 = vst [vmem:[#allocation2 + $0xd8] sm:$0xff] 0.0
          %360 = vst [vmem:[#allocation2 + $0xe0] sm:$0xff] 0.0
          %361 = vst [vmem:[#allocation2 + $0xe8] sm:$0xff] 0.0
          %362 = vst [vmem:[#allocation2 + $0xf0] sm:$0xff] 0.0
          %363 = vst [vmem:[#allocation2 + $0xf8] sm:$0xff] 0.0
        $region48: #{tpu_custom_call.1} parent=31 // pred_fallthru
          _
        %v364 = vld [vmem:[#allocation2] sm:$0xff]
        %v365 = vld [vmem:[#allocation2 + $0x8] sm:$0xff]
        %v366 = vld [vmem:[#allocation2 + $0x10] sm:$0xff]
        %v367 = vld [vmem:[#allocation2 + $0x18] sm:$0xff]
        %v368 = vld [vmem:[#allocation2 + $0x20] sm:$0xff]
        %v369 = vld [vmem:[#allocation2 + $0x28] sm:$0xff]
        %v370 = vld [vmem:[#allocation2 + $0x30] sm:$0xff]
        %v371 = vld [vmem:[#allocation2 + $0x38] sm:$0xff]
        %v372 = vld [vmem:[#allocation2 + $0x40] sm:$0xff]
        %v373 = vld [vmem:[#allocation2 + $0x48] sm:$0xff]
        %v374 = vld [vmem:[#allocation2 + $0x50] sm:$0xff]
        %v375 = vld [vmem:[#allocation2 + $0x58] sm:$0xff]
        %v376 = vld [vmem:[#allocation2 + $0x60] sm:$0xff]
        %v377 = vld [vmem:[#allocation2 + $0x68] sm:$0xff]
        %v378 = vld [vmem:[#allocation2 + $0x70] sm:$0xff]
        %v379 = vld [vmem:[#allocation2 + $0x78] sm:$0xff]
        %v380 = vld [vmem:[#allocation2 + $0x80] sm:$0xff]
        %v381 = vld [vmem:[#allocation2 + $0x88] sm:$0xff]
        %v382 = vld [vmem:[#allocation2 + $0x90] sm:$0xff]
        %v383 = vld [vmem:[#allocation2 + $0x98] sm:$0xff]
        %v384 = vld [vmem:[#allocation2 + $0xa0] sm:$0xff]
        %v385 = vld [vmem:[#allocation2 + $0xa8] sm:$0xff]
        %v386 = vld [vmem:[#allocation2 + $0xb0] sm:$0xff]
        %v387 = vld [vmem:[#allocation2 + $0xb8] sm:$0xff]
        %v388 = vld [vmem:[#allocation2 + $0xc0] sm:$0xff]
        %v389 = vld [vmem:[#allocation2 + $0xc8] sm:$0xff]
        %v390 = vld [vmem:[#allocation2 + $0xd0] sm:$0xff]
        %v391 = vld [vmem:[#allocation2 + $0xd8] sm:$0xff]
        %v392 = vld [vmem:[#allocation2 + $0xe0] sm:$0xff]
        %v393 = vld [vmem:[#allocation2 + $0xe8] sm:$0xff]
        %v394 = vld [vmem:[#allocation2 + $0xf0] sm:$0xff]
        %v395 = vld [vmem:[#allocation2 + $0xf8] sm:$0xff]
        %v396 = vld [vmem:[%s263] sm:$0xff]
        %v397 = vld [vmem:[%s263 + $0x8] sm:$0xff]
        %v398 = vld [vmem:[%s263 + $0x10] sm:$0xff]
        %v399 = vld [vmem:[%s263 + $0x18] sm:$0xff]
        %v400 = vld [vmem:[%s263 + $0x20] sm:$0xff]
        %v401 = vld [vmem:[%s263 + $0x28] sm:$0xff]
        %v402 = vld [vmem:[%s263 + $0x30] sm:$0xff]
        %v403 = vld [vmem:[%s263 + $0x38] sm:$0xff]
        %v404 = vld [vmem:[%s263 + $0x40] sm:$0xff]
        %v405 = vld [vmem:[%s263 + $0x48] sm:$0xff]
        %v406 = vld [vmem:[%s263 + $0x50] sm:$0xff]
        %v407 = vld [vmem:[%s263 + $0x58] sm:$0xff]
        %v408 = vld [vmem:[%s263 + $0x60] sm:$0xff]
        %v409 = vld [vmem:[%s263 + $0x68] sm:$0xff]
        %v410 = vld [vmem:[%s263 + $0x70] sm:$0xff]
        %v411 = vld [vmem:[%s263 + $0x78] sm:$0xff]
        %v412 = vld [vmem:[%s263 + $0x80] sm:$0xff]
        %v413 = vld [vmem:[%s263 + $0x88] sm:$0xff]
        %v414 = vld [vmem:[%s263 + $0x90] sm:$0xff]
        %v415 = vld [vmem:[%s263 + $0x98] sm:$0xff]
        %v416 = vld [vmem:[%s263 + $0xa0] sm:$0xff]
        %v417 = vld [vmem:[%s263 + $0xa8] sm:$0xff]
        %v418 = vld [vmem:[%s263 + $0xb0] sm:$0xff]
        %v419 = vld [vmem:[%s263 + $0xb8] sm:$0xff]
        %v420 = vld [vmem:[%s263 + $0xc0] sm:$0xff]
        %v421 = vld [vmem:[%s263 + $0xc8] sm:$0xff]
        %v422 = vld [vmem:[%s263 + $0xd0] sm:$0xff]
        %v423 = vld [vmem:[%s263 + $0xd8] sm:$0xff]
        %v424 = vld [vmem:[%s263 + $0xe0] sm:$0xff]
        %v425 = vld [vmem:[%s263 + $0xe8] sm:$0xff]
        %v426 = vld [vmem:[%s263 + $0xf0] sm:$0xff]
        %v427 = vld [vmem:[%s263 + $0xf8] sm:$0xff]
        %v428 = vld [vmem:[%s272] sm:$0xf]
        %v429 = vld [vmem:[%s272 + $0x4] sm:$0xf]
        %v430 = vld [vmem:[%s272 + $0x8] sm:$0xf]
        %v431 = vld [vmem:[%s272 + $0xc] sm:$0xf]
        %v432 = vld [vmem:[%s272 + $0x10] sm:$0xf]
        %v433 = vld [vmem:[%s272 + $0x14] sm:$0xf]
        %v434 = vld [vmem:[%s272 + $0x18] sm:$0xf]
        %v435 = vld [vmem:[%s272 + $0x1c] sm:$0xf]
        %v436 = vld [vmem:[%s272 + $0x20] sm:$0xf]
        %v437 = vld [vmem:[%s272 + $0x24] sm:$0xf]
        %v438 = vld [vmem:[%s272 + $0x28] sm:$0xf]
        %v439 = vld [vmem:[%s272 + $0x2c] sm:$0xf]
        %v440 = vld [vmem:[%s272 + $0x30] sm:$0xf]
        %v441 = vld [vmem:[%s272 + $0x34] sm:$0xf]
        %v442 = vld [vmem:[%s272 + $0x38] sm:$0xf]
        %v443 = vld [vmem:[%s272 + $0x3c] sm:$0xf]
        %v444 = vld [vmem:[%s272 + $0x40] sm:$0xf]
        %v445 = vld [vmem:[%s272 + $0x44] sm:$0xf]
        %v446 = vld [vmem:[%s272 + $0x48] sm:$0xf]
        %v447 = vld [vmem:[%s272 + $0x4c] sm:$0xf]
        %v448 = vld [vmem:[%s272 + $0x50] sm:$0xf]
        %v449 = vld [vmem:[%s272 + $0x54] sm:$0xf]
        %v450 = vld [vmem:[%s272 + $0x58] sm:$0xf]
        %v451 = vld [vmem:[%s272 + $0x5c] sm:$0xf]
        %v452 = vld [vmem:[%s272 + $0x60] sm:$0xf]
        %v453 = vld [vmem:[%s272 + $0x64] sm:$0xf]
        %v454 = vld [vmem:[%s272 + $0x68] sm:$0xf]
        %v455 = vld [vmem:[%s272 + $0x6c] sm:$0xf]
        %v456 = vld [vmem:[%s272 + $0x70] sm:$0xf]
        %v457 = vld [vmem:[%s272 + $0x74] sm:$0xf]
        %v458 = vld [vmem:[%s272 + $0x78] sm:$0xf]
        %v459 = vld [vmem:[%s272 + $0x7c] sm:$0xf]
        %v492 = vunpack.c.l.b16 %v396
        %v493 = vunpack.c.h.b16 %v396
        %v494 = vunpack.c.l.b16 %v397
        %v495 = vunpack.c.h.b16 %v397
        %v496 = vunpack.c.l.b16 %v398
        %v497 = vunpack.c.h.b16 %v398
        %v498 = vunpack.c.l.b16 %v399
        %v499 = vunpack.c.h.b16 %v399
        %v500 = vunpack.c.l.b16 %v400
        %v501 = vunpack.c.h.b16 %v400
        %v502 = vunpack.c.l.b16 %v401
        %v503 = vunpack.c.h.b16 %v401
        %v504 = vunpack.c.l.b16 %v402
        %v505 = vunpack.c.h.b16 %v402
        %v506 = vunpack.c.l.b16 %v403
        %v507 = vunpack.c.h.b16 %v403
        %v508 = vunpack.c.l.b16 %v404
        %v509 = vunpack.c.h.b16 %v404
        %v510 = vunpack.c.l.b16 %v405
        %v511 = vunpack.c.h.b16 %v405
        %v512 = vunpack.c.l.b16 %v406
        %v513 = vunpack.c.h.b16 %v406
        %v514 = vunpack.c.l.b16 %v407
        %v515 = vunpack.c.h.b16 %v407
        %v516 = vunpack.c.l.b16 %v408
        %v517 = vunpack.c.h.b16 %v408
        %v518 = vunpack.c.l.b16 %v409
        %v519 = vunpack.c.h.b16 %v409
        %v520 = vunpack.c.l.b16 %v410
        %v521 = vunpack.c.h.b16 %v410
        %v522 = vunpack.c.l.b16 %v411
        %v523 = vunpack.c.h.b16 %v411
        %v524 = vunpack.c.l.b16 %v412
        %v525 = vunpack.c.h.b16 %v412
        %v526 = vunpack.c.l.b16 %v413
        %v527 = vunpack.c.h.b16 %v413
        %v528 = vunpack.c.l.b16 %v414
        %v529 = vunpack.c.h.b16 %v414
        %v530 = vunpack.c.l.b16 %v415
        %v531 = vunpack.c.h.b16 %v415
        %v532 = vunpack.c.l.b16 %v416
        %v533 = vunpack.c.h.b16 %v416
        %v534 = vunpack.c.l.b16 %v417
        %v535 = vunpack.c.h.b16 %v417
        %v536 = vunpack.c.l.b16 %v418
        %v537 = vunpack.c.h.b16 %v418
        %v538 = vunpack.c.l.b16 %v419
        %v539 = vunpack.c.h.b16 %v419
        %v540 = vunpack.c.l.b16 %v420
        %v541 = vunpack.c.h.b16 %v420
        %v542 = vunpack.c.l.b16 %v421
        %v543 = vunpack.c.h.b16 %v421
        %v544 = vunpack.c.l.b16 %v422
        %v545 = vunpack.c.h.b16 %v422
        %v546 = vunpack.c.l.b16 %v423
        %v547 = vunpack.c.h.b16 %v423
        %v548 = vunpack.c.l.b16 %v424
        %v549 = vunpack.c.h.b16 %v424
        %v550 = vunpack.c.l.b16 %v425
        %v551 = vunpack.c.h.b16 %v425
        %v552 = vunpack.c.l.b16 %v426
        %v553 = vunpack.c.h.b16 %v426
        %v554 = vunpack.c.l.b16 %v427
        %v555 = vunpack.c.h.b16 %v427
        %v556 = vpack.c.b16 %v494, %v492
        %v557 = vpack.c.b16 %v495, %v493
        %v558 = vpack.c.b16 %v498, %v496
        %v559 = vpack.c.b16 %v499, %v497
        %v560 = vpack.c.b16 %v502, %v500
        %v561 = vpack.c.b16 %v503, %v501
        %v562 = vpack.c.b16 %v506, %v504
        %v563 = vpack.c.b16 %v507, %v505
        %v564 = vpack.c.b16 %v510, %v508
        %v565 = vpack.c.b16 %v511, %v509
        %v566 = vpack.c.b16 %v514, %v512
        %v567 = vpack.c.b16 %v515, %v513
        %v568 = vpack.c.b16 %v518, %v516
        %v569 = vpack.c.b16 %v519, %v517
        %v570 = vpack.c.b16 %v522, %v520
        %v571 = vpack.c.b16 %v523, %v521
        %v572 = vpack.c.b16 %v526, %v524
        %v573 = vpack.c.b16 %v527, %v525
        %v574 = vpack.c.b16 %v530, %v528
        %v575 = vpack.c.b16 %v531, %v529
        %v576 = vpack.c.b16 %v534, %v532
        %v577 = vpack.c.b16 %v535, %v533
        %v578 = vpack.c.b16 %v538, %v536
        %v579 = vpack.c.b16 %v539, %v537
        %v580 = vpack.c.b16 %v542, %v540
        %v581 = vpack.c.b16 %v543, %v541
        %v582 = vpack.c.b16 %v546, %v544
        %v583 = vpack.c.b16 %v547, %v545
        %v584 = vpack.c.b16 %v550, %v548
        %v585 = vpack.c.b16 %v551, %v549
        %v586 = vpack.c.b16 %v554, %v552
        %v587 = vpack.c.b16 %v555, %v553
        %v652 = vunpack.c.l.b16 %v428
        %v653 = vunpack.c.l.b16 %v429
        %v654 = vunpack.c.l.b16 %v430
        %v655 = vunpack.c.l.b16 %v431
        %v656 = vunpack.c.l.b16 %v432
        %v657 = vunpack.c.l.b16 %v433
        %v658 = vunpack.c.l.b16 %v434
        %v659 = vunpack.c.l.b16 %v435
        %v660 = vunpack.c.l.b16 %v436
        %v661 = vunpack.c.l.b16 %v437
        %v662 = vunpack.c.l.b16 %v438
        %v663 = vunpack.c.l.b16 %v439
        %v664 = vunpack.c.l.b16 %v440
        %v665 = vunpack.c.l.b16 %v441
        %v666 = vunpack.c.l.b16 %v442
        %v667 = vunpack.c.l.b16 %v443
        %v668 = vunpack.c.l.b16 %v444
        %v669 = vunpack.c.l.b16 %v445
        %v670 = vunpack.c.l.b16 %v446
        %v671 = vunpack.c.l.b16 %v447
        %v672 = vunpack.c.l.b16 %v448
        %v673 = vunpack.c.l.b16 %v449
        %v674 = vunpack.c.l.b16 %v450
        %v675 = vunpack.c.l.b16 %v451
        %v676 = vunpack.c.l.b16 %v452
        %v677 = vunpack.c.l.b16 %v453
        %v678 = vunpack.c.l.b16 %v454
        %v679 = vunpack.c.l.b16 %v455
        %v680 = vunpack.c.l.b16 %v456
        %v681 = vunpack.c.l.b16 %v457
        %v682 = vunpack.c.l.b16 %v458
        %v683 = vunpack.c.l.b16 %v459
        %v684 = vpack.c.b16 %v653, %v652
        %v685 = vpack.c.b16 %v655, %v654
        %v686 = vpack.c.b16 %v657, %v656
        %v687 = vpack.c.b16 %v659, %v658
        %v688 = vpack.c.b16 %v661, %v660
        %v689 = vpack.c.b16 %v663, %v662
        %v690 = vpack.c.b16 %v665, %v664
        %v691 = vpack.c.b16 %v667, %v666
        %v692 = vpack.c.b16 %v669, %v668
        %v693 = vpack.c.b16 %v671, %v670
        %v694 = vpack.c.b16 %v673, %v672
        %v695 = vpack.c.b16 %v675, %v674
        %v696 = vpack.c.b16 %v677, %v676
        %v697 = vpack.c.b16 %v679, %v678
        %v698 = vpack.c.b16 %v681, %v680
        %v699 = vpack.c.b16 %v683, %v682
        %716 = vmatprep.subr.bf16.mxu0 0
        %717 = vmatpush1.bf16.msra.mxu0 %v691
        %718 = vmatprep.subr.bf16.mxu0 0
        %719 = vmatpush1.bf16.msra.mxu0 %v690
        %720 = vmatprep.subr.bf16.mxu0 0
        %721 = vmatpush1.bf16.msra.mxu0 %v689
        %722 = vmatprep.subr.bf16.mxu0 0
        %723 = vmatpush1.bf16.msra.mxu0 %v688
        %724 = vmatprep.subr.bf16.mxu0 0
        %725 = vmatpush1.bf16.msra.mxu0 %v687
        %726 = vmatprep.subr.bf16.mxu0 0
        %727 = vmatpush1.bf16.msra.mxu0 %v686
        %728 = vmatprep.subr.bf16.mxu0 0
        %729 = vmatpush1.bf16.msra.mxu0 %v685
        %730 = vmatprep.subr.bf16.mxu0 0
        %731 = vmatpush1.bf16.msra.mxu0 %v684
        %732 = vmatprep.subr.bf16.mxu0 0
        %733 = vmatpush2.bf16.msra.mxu0 %v699
        %734 = vmatprep.subr.bf16.mxu0 0
        %735 = vmatpush2.bf16.msra.mxu0 %v698
        %736 = vmatprep.subr.bf16.mxu0 0
        %737 = vmatpush2.bf16.msra.mxu0 %v697
        %738 = vmatprep.subr.bf16.mxu0 0
        %739 = vmatpush2.bf16.msra.mxu0 %v696
        %740 = vmatprep.subr.bf16.mxu0 0
        %741 = vmatpush2.bf16.msra.mxu0 %v695
        %742 = vmatprep.subr.bf16.mxu0 0
        %743 = vmatpush2.bf16.msra.mxu0 %v694
        %744 = vmatprep.subr.bf16.mxu0 0
        %745 = vmatpush2.bf16.msra.mxu0 %v693
        %746 = vmatprep.subr.bf16.mxu0 0
        %747 = vmatpush2.bf16.msra.mxu0 %v692
        %748 = vmatprep.mubr.bf16.mxu0 %v557
        %749 = vmatmul.mubr.bf16.gmra.mxu0 %v556
        %v750 = vpop.f32.mrf.mxu0
        %v751 = vadd.f32 0.0, %v750
        %v752 = vpop.f32.mrf.mxu0
        %v753 = vpop.f32.mrf.mxu0
        %v754 = vadd.f32 0.0, %v753
        %v755 = vpop.f32.mrf.mxu0
        %756 = vmatprep.mubr.bf16.mxu0 %v559
        %757 = vmatmul.mubr.bf16.gmra.mxu0 %v558
        %v758 = vpop.f32.mrf.mxu0
        %v759 = vadd.f32 0.0, %v758
        %v760 = vpop.f32.mrf.mxu0
        %v761 = vpop.f32.mrf.mxu0
        %v762 = vadd.f32 0.0, %v761
        %v763 = vpop.f32.mrf.mxu0
        %764 = vmatprep.mubr.bf16.mxu0 %v561
        %765 = vmatmul.mubr.bf16.gmra.mxu0 %v560
        %v766 = vpop.f32.mrf.mxu0
        %v767 = vadd.f32 0.0, %v766
        %v768 = vpop.f32.mrf.mxu0
        %v769 = vpop.f32.mrf.mxu0
        %v770 = vadd.f32 0.0, %v769
        %v771 = vpop.f32.mrf.mxu0
        %772 = vmatprep.mubr.bf16.mxu0 %v563
        %773 = vmatmul.mubr.bf16.gmra.mxu0 %v562
        %v774 = vpop.f32.mrf.mxu0
        %v775 = vadd.f32 0.0, %v774
        %v776 = vpop.f32.mrf.mxu0
        %v777 = vpop.f32.mrf.mxu0
        %v778 = vadd.f32 0.0, %v777
        %v779 = vpop.f32.mrf.mxu0
        %780 = vmatprep.mubr.bf16.mxu0 %v565
        %781 = vmatmul.mubr.bf16.gmra.mxu0 %v564
        %v782 = vpop.f32.mrf.mxu0
        %v783 = vadd.f32 0.0, %v782
        %v784 = vpop.f32.mrf.mxu0
        %v785 = vpop.f32.mrf.mxu0
        %v786 = vadd.f32 0.0, %v785
        %v787 = vpop.f32.mrf.mxu0
        %788 = vmatprep.mubr.bf16.mxu0 %v567
        %789 = vmatmul.mubr.bf16.gmra.mxu0 %v566
        %v790 = vpop.f32.mrf.mxu0
        %v791 = vadd.f32 0.0, %v790
        %v792 = vpop.f32.mrf.mxu0
        %v793 = vpop.f32.mrf.mxu0
        %v794 = vadd.f32 0.0, %v793
        %v795 = vpop.f32.mrf.mxu0
        %796 = vmatprep.mubr.bf16.mxu0 %v569
        %797 = vmatmul.mubr.bf16.gmra.mxu0 %v568
        %v798 = vpop.f32.mrf.mxu0
        %v799 = vadd.f32 0.0, %v798
        %v800 = vpop.f32.mrf.mxu0
        %v801 = vpop.f32.mrf.mxu0
        %v802 = vadd.f32 0.0, %v801
        %v803 = vpop.f32.mrf.mxu0
        %804 = vmatprep.mubr.bf16.mxu0 %v571
        %805 = vmatmul.mubr.bf16.gmra.mxu0 %v570
        %v806 = vpop.f32.mrf.mxu0
        %v807 = vadd.f32 0.0, %v806
        %v808 = vpop.f32.mrf.mxu0
        %v809 = vpop.f32.mrf.mxu0
        %v810 = vadd.f32 0.0, %v809
        %v811 = vpop.f32.mrf.mxu0
        %812 = vmatprep.mubr.bf16.mxu0 %v573
        %813 = vmatmul.mubr.bf16.gmra.mxu0 %v572
        %v814 = vpop.f32.mrf.mxu0
        %v815 = vadd.f32 0.0, %v814
        %v816 = vpop.f32.mrf.mxu0
        %v817 = vpop.f32.mrf.mxu0
        %v818 = vadd.f32 0.0, %v817
        %v819 = vpop.f32.mrf.mxu0
        %820 = vmatprep.mubr.bf16.mxu0 %v575
        %821 = vmatmul.mubr.bf16.gmra.mxu0 %v574
        %v822 = vpop.f32.mrf.mxu0
        %v823 = vadd.f32 0.0, %v822
        %v824 = vpop.f32.mrf.mxu0
        %v825 = vpop.f32.mrf.mxu0
        %v826 = vadd.f32 0.0, %v825
        %v827 = vpop.f32.mrf.mxu0
        %828 = vmatprep.mubr.bf16.mxu0 %v577
        %829 = vmatmul.mubr.bf16.gmra.mxu0 %v576
        %v830 = vpop.f32.mrf.mxu0
        %v831 = vadd.f32 0.0, %v830
        %v832 = vpop.f32.mrf.mxu0
        %v833 = vpop.f32.mrf.mxu0
        %v834 = vadd.f32 0.0, %v833
        %v835 = vpop.f32.mrf.mxu0
        %836 = vmatprep.mubr.bf16.mxu0 %v579
        %837 = vmatmul.mubr.bf16.gmra.mxu0 %v578
        %v838 = vpop.f32.mrf.mxu0
        %v839 = vadd.f32 0.0, %v838
        %v840 = vpop.f32.mrf.mxu0
        %v841 = vpop.f32.mrf.mxu0
        %v842 = vadd.f32 0.0, %v841
        %v843 = vpop.f32.mrf.mxu0
        %844 = vmatprep.mubr.bf16.mxu0 %v581
        %845 = vmatmul.mubr.bf16.gmra.mxu0 %v580
        %v846 = vpop.f32.mrf.mxu0
        %v847 = vadd.f32 0.0, %v846
        %v848 = vpop.f32.mrf.mxu0
        %v849 = vpop.f32.mrf.mxu0
        %v850 = vadd.f32 0.0, %v849
        %v851 = vpop.f32.mrf.mxu0
        %852 = vmatprep.mubr.bf16.mxu0 %v583
        %853 = vmatmul.mubr.bf16.gmra.mxu0 %v582
        %v854 = vpop.f32.mrf.mxu0
        %v855 = vadd.f32 0.0, %v854
        %v856 = vpop.f32.mrf.mxu0
        %v857 = vpop.f32.mrf.mxu0
        %v858 = vadd.f32 0.0, %v857
        %v859 = vpop.f32.mrf.mxu0
        %860 = vmatprep.mubr.bf16.mxu0 %v585
        %861 = vmatmul.mubr.bf16.gmra.mxu0 %v584
        %v862 = vpop.f32.mrf.mxu0
        %v863 = vadd.f32 0.0, %v862
        %v864 = vpop.f32.mrf.mxu0
        %v865 = vpop.f32.mrf.mxu0
        %v866 = vadd.f32 0.0, %v865
        %v867 = vpop.f32.mrf.mxu0
        %868 = vmatprep.mubr.bf16.mxu0 %v587
        %869 = vmatmul.mubr.bf16.gmra.mxu0 %v586
        %v870 = vpop.f32.mrf.mxu0
        %v871 = vadd.f32 0.0, %v870
        %v872 = vpop.f32.mrf.mxu0
        %v873 = vpop.f32.mrf.mxu0
        %v874 = vadd.f32 0.0, %v873
        %v875 = vpop.f32.mrf.mxu0
        %876 = vdwg.mxu0
        %v877 = vadd.f32 %v364, %v751
        %v878 = vadd.f32 %v365, %v754
        %v879 = vadd.f32 %v366, %v759
        %v880 = vadd.f32 %v367, %v762
        %v881 = vadd.f32 %v368, %v767
        %v882 = vadd.f32 %v369, %v770
        %v883 = vadd.f32 %v370, %v775
        %v884 = vadd.f32 %v371, %v778
        %v885 = vadd.f32 %v372, %v783
        %v886 = vadd.f32 %v373, %v786
        %v887 = vadd.f32 %v374, %v791
        %v888 = vadd.f32 %v375, %v794
        %v889 = vadd.f32 %v376, %v799
        %v890 = vadd.f32 %v377, %v802
        %v891 = vadd.f32 %v378, %v807
        %v892 = vadd.f32 %v379, %v810
        %v893 = vadd.f32 %v380, %v815
        %v894 = vadd.f32 %v381, %v818
        %v895 = vadd.f32 %v382, %v823
        %v896 = vadd.f32 %v383, %v826
        %v897 = vadd.f32 %v384, %v831
        %v898 = vadd.f32 %v385, %v834
        %v899 = vadd.f32 %v386, %v839
        %v900 = vadd.f32 %v387, %v842
        %v901 = vadd.f32 %v388, %v847
        %v902 = vadd.f32 %v389, %v850
        %v903 = vadd.f32 %v390, %v855
        %v904 = vadd.f32 %v391, %v858
        %v905 = vadd.f32 %v392, %v863
        %v906 = vadd.f32 %v393, %v866
        %v907 = vadd.f32 %v394, %v871
        %v908 = vadd.f32 %v395, %v874
        %909 = vst [vmem:[#allocation2] sm:$0xff] %v877
        %910 = vst [vmem:[#allocation2 + $0x8] sm:$0xff] %v878
        %911 = vst [vmem:[#allocation2 + $0x10] sm:$0xff] %v879
        %912 = vst [vmem:[#allocation2 + $0x18] sm:$0xff] %v880
        %913 = vst [vmem:[#allocation2 + $0x20] sm:$0xff] %v881
        %914 = vst [vmem:[#allocation2 + $0x28] sm:$0xff] %v882
        %915 = vst [vmem:[#allocation2 + $0x30] sm:$0xff] %v883
        %916 = vst [vmem:[#allocation2 + $0x38] sm:$0xff] %v884
        %917 = vst [vmem:[#allocation2 + $0x40] sm:$0xff] %v885
        %918 = vst [vmem:[#allocation2 + $0x48] sm:$0xff] %v886
        %919 = vst [vmem:[#allocation2 + $0x50] sm:$0xff] %v887
        %920 = vst [vmem:[#allocation2 + $0x58] sm:$0xff] %v888
        %921 = vst [vmem:[#allocation2 + $0x60] sm:$0xff] %v889
        %922 = vst [vmem:[#allocation2 + $0x68] sm:$0xff] %v890
        %923 = vst [vmem:[#allocation2 + $0x70] sm:$0xff] %v891
        %924 = vst [vmem:[#allocation2 + $0x78] sm:$0xff] %v892
        %925 = vst [vmem:[#allocation2 + $0x80] sm:$0xff] %v893
        %926 = vst [vmem:[#allocation2 + $0x88] sm:$0xff] %v894
        %927 = vst [vmem:[#allocation2 + $0x90] sm:$0xff] %v895
        %928 = vst [vmem:[#allocation2 + $0x98] sm:$0xff] %v896
        %929 = vst [vmem:[#allocation2 + $0xa0] sm:$0xff] %v897
        %930 = vst [vmem:[#allocation2 + $0xa8] sm:$0xff] %v898
        %931 = vst [vmem:[#allocation2 + $0xb0] sm:$0xff] %v899
        %932 = vst [vmem:[#allocation2 + $0xb8] sm:$0xff] %v900
        %933 = vst [vmem:[#allocation2 + $0xc0] sm:$0xff] %v901
        %934 = vst [vmem:[#allocation2 + $0xc8] sm:$0xff] %v902
        %935 = vst [vmem:[#allocation2 + $0xd0] sm:$0xff] %v903
        %936 = vst [vmem:[#allocation2 + $0xd8] sm:$0xff] %v904
        %937 = vst [vmem:[#allocation2 + $0xe0] sm:$0xff] %v905
        %938 = vst [vmem:[#allocation2 + $0xe8] sm:$0xff] %v906
        %939 = vst [vmem:[#allocation2 + $0xf0] sm:$0xff] %v907
        %940 = vst [vmem:[#allocation2 + $0xf8] sm:$0xff] %v908
        %p941 = scmp.eq.s32.totalorder %s33, 1
        // Predicated region
        $region49: #{tpu_custom_call.1} parent=31 // pred_check
          %p942 = pneg %p941
        $region50: #{tpu_custom_call.1} parent=31 // pred_check_branch
          %944 = sbr.rel (%p942) target = $region52
        $region51: #{tpu_custom_call.1} parent=31 // pred_region
          %v945 = vld [vmem:[#allocation2] sm:$0xff]
          %v946 = vld [vmem:[#allocation2 + $0x8] sm:$0xff]
          %v947 = vld [vmem:[#allocation2 + $0x10] sm:$0xff]
          %v948 = vld [vmem:[#allocation2 + $0x18] sm:$0xff]
          %v949 = vld [vmem:[#allocation2 + $0x20] sm:$0xff]
          %v950 = vld [vmem:[#allocation2 + $0x28] sm:$0xff]
          %v951 = vld [vmem:[#allocation2 + $0x30] sm:$0xff]
          %v952 = vld [vmem:[#allocation2 + $0x38] sm:$0xff]
          %v953 = vld [vmem:[#allocation2 + $0x40] sm:$0xff]
          %v954 = vld [vmem:[#allocation2 + $0x48] sm:$0xff]
          %v955 = vld [vmem:[#allocation2 + $0x50] sm:$0xff]
          %v956 = vld [vmem:[#allocation2 + $0x58] sm:$0xff]
          %v957 = vld [vmem:[#allocation2 + $0x60] sm:$0xff]
          %v958 = vld [vmem:[#allocation2 + $0x68] sm:$0xff]
          %v959 = vld [vmem:[#allocation2 + $0x70] sm:$0xff]
          %v960 = vld [vmem:[#allocation2 + $0x78] sm:$0xff]
          %v961 = vld [vmem:[#allocation2 + $0x80] sm:$0xff]
          %v962 = vld [vmem:[#allocation2 + $0x88] sm:$0xff]
          %v963 = vld [vmem:[#allocation2 + $0x90] sm:$0xff]
          %v964 = vld [vmem:[#allocation2 + $0x98] sm:$0xff]
          %v965 = vld [vmem:[#allocation2 + $0xa0] sm:$0xff]
          %v966 = vld [vmem:[#allocation2 + $0xa8] sm:$0xff]
          %v967 = vld [vmem:[#allocation2 + $0xb0] sm:$0xff]
          %v968 = vld [vmem:[#allocation2 + $0xb8] sm:$0xff]
          %v969 = vld [vmem:[#allocation2 + $0xc0] sm:$0xff]
          %v970 = vld [vmem:[#allocation2 + $0xc8] sm:$0xff]
          %v971 = vld [vmem:[#allocation2 + $0xd0] sm:$0xff]
          %v972 = vld [vmem:[#allocation2 + $0xd8] sm:$0xff]
          %v973 = vld [vmem:[#allocation2 + $0xe0] sm:$0xff]
          %v974 = vld [vmem:[#allocation2 + $0xe8] sm:$0xff]
          %v975 = vld [vmem:[#allocation2 + $0xf0] sm:$0xff]
          %v976 = vld [vmem:[#allocation2 + $0xf8] sm:$0xff]
          %v977 = vpack.c.bf16 %v946, %v945
          %v978 = vpack.c.bf16 %v948, %v947
          %v979 = vpack.c.bf16 %v950, %v949
          %v980 = vpack.c.bf16 %v952, %v951
          %v981 = vpack.c.bf16 %v954, %v953
          %v982 = vpack.c.bf16 %v956, %v955
          %v983 = vpack.c.bf16 %v958, %v957
          %v984 = vpack.c.bf16 %v960, %v959
          %v985 = vpack.c.bf16 %v962, %v961
          %v986 = vpack.c.bf16 %v964, %v963
          %v987 = vpack.c.bf16 %v966, %v965
          %v988 = vpack.c.bf16 %v968, %v967
          %v989 = vpack.c.bf16 %v970, %v969
          %v990 = vpack.c.bf16 %v972, %v971
          %v991 = vpack.c.bf16 %v974, %v973
          %v992 = vpack.c.bf16 %v976, %v975
          %v1009 = vunpack.c.l.b16 %v977
          %v1010 = vunpack.c.h.b16 %v977
          %v1011 = vunpack.c.l.b16 %v978
          %v1012 = vunpack.c.h.b16 %v978
          %v1013 = vunpack.c.l.b16 %v979
          %v1014 = vunpack.c.h.b16 %v979
          %v1015 = vunpack.c.l.b16 %v980
          %v1016 = vunpack.c.h.b16 %v980
          %v1017 = vunpack.c.l.b16 %v981
          %v1018 = vunpack.c.h.b16 %v981
          %v1019 = vunpack.c.l.b16 %v982
          %v1020 = vunpack.c.h.b16 %v982
          %v1021 = vunpack.c.l.b16 %v983
          %v1022 = vunpack.c.h.b16 %v983
          %v1023 = vunpack.c.l.b16 %v984
          %v1024 = vunpack.c.h.b16 %v984
          %v1025 = vunpack.c.l.b16 %v985
          %v1026 = vunpack.c.h.b16 %v985
          %v1027 = vunpack.c.l.b16 %v986
          %v1028 = vunpack.c.h.b16 %v986
          %v1029 = vunpack.c.l.b16 %v987
          %v1030 = vunpack.c.h.b16 %v987
          %v1031 = vunpack.c.l.b16 %v988
          %v1032 = vunpack.c.h.b16 %v988
          %v1033 = vunpack.c.l.b16 %v989
          %v1034 = vunpack.c.h.b16 %v989
          %v1035 = vunpack.c.l.b16 %v990
          %v1036 = vunpack.c.h.b16 %v990
          %v1037 = vunpack.c.l.b16 %v991
          %v1038 = vunpack.c.h.b16 %v991
          %v1039 = vunpack.c.l.b16 %v992
          %v1040 = vunpack.c.h.b16 %v992
          %v1041 = vpack.c.b16 %v1009, %v1009
          %v1042 = vpack.c.b16 %v1010, %v1010
          %v1043 = vpack.c.b16 %v1011, %v1011
          %v1044 = vpack.c.b16 %v1012, %v1012
          %v1045 = vpack.c.b16 %v1013, %v1013
          %v1046 = vpack.c.b16 %v1014, %v1014
          %v1047 = vpack.c.b16 %v1015, %v1015
          %v1048 = vpack.c.b16 %v1016, %v1016
          %v1049 = vpack.c.b16 %v1017, %v1017
          %v1050 = vpack.c.b16 %v1018, %v1018
          %v1051 = vpack.c.b16 %v1019, %v1019
          %v1052 = vpack.c.b16 %v1020, %v1020
          %v1053 = vpack.c.b16 %v1021, %v1021
          %v1054 = vpack.c.b16 %v1022, %v1022
          %v1055 = vpack.c.b16 %v1023, %v1023
          %v1056 = vpack.c.b16 %v1024, %v1024
          %v1057 = vpack.c.b16 %v1025, %v1025
          %v1058 = vpack.c.b16 %v1026, %v1026
          %v1059 = vpack.c.b16 %v1027, %v1027
          %v1060 = vpack.c.b16 %v1028, %v1028
          %v1061 = vpack.c.b16 %v1029, %v1029
          %v1062 = vpack.c.b16 %v1030, %v1030
          %v1063 = vpack.c.b16 %v1031, %v1031
          %v1064 = vpack.c.b16 %v1032, %v1032
          %v1065 = vpack.c.b16 %v1033, %v1033
          %v1066 = vpack.c.b16 %v1034, %v1034
          %v1067 = vpack.c.b16 %v1035, %v1035
          %v1068 = vpack.c.b16 %v1036, %v1036
          %v1069 = vpack.c.b16 %v1037, %v1037
          %v1070 = vpack.c.b16 %v1038, %v1038
          %v1071 = vpack.c.b16 %v1039, %v1039
          %v1072 = vpack.c.b16 %v1040, %v1040
          %1105 = vst [vmem:[%s313] sm:$0xf] %v1041
          %1106 = vst [vmem:[%s313 + $0x4] sm:$0xf] %v1042
          %1107 = vst [vmem:[%s313 + $0x8] sm:$0xf] %v1043
          %1108 = vst [vmem:[%s313 + $0xc] sm:$0xf] %v1044
          %1109 = vst [vmem:[%s313 + $0x10] sm:$0xf] %v1045
          %1110 = vst [vmem:[%s313 + $0x14] sm:$0xf] %v1046
          %1111 = vst [vmem:[%s313 + $0x18] sm:$0xf] %v1047
          %1112 = vst [vmem:[%s313 + $0x1c] sm:$0xf] %v1048
          %1113 = vst [vmem:[%s313 + $0x20] sm:$0xf] %v1049
          %1114 = vst [vmem:[%s313 + $0x24] sm:$0xf] %v1050
          %1115 = vst [vmem:[%s313 + $0x28] sm:$0xf] %v1051
          %1116 = vst [vmem:[%s313 + $0x2c] sm:$0xf] %v1052
          %1117 = vst [vmem:[%s313 + $0x30] sm:$0xf] %v1053
          %1118 = vst [vmem:[%s313 + $0x34] sm:$0xf] %v1054
          %1119 = vst [vmem:[%s313 + $0x38] sm:$0xf] %v1055
          %1120 = vst [vmem:[%s313 + $0x3c] sm:$0xf] %v1056
          %1121 = vst [vmem:[%s313 + $0x40] sm:$0xf] %v1057
          %1122 = vst [vmem:[%s313 + $0x44] sm:$0xf] %v1058
          %1123 = vst [vmem:[%s313 + $0x48] sm:$0xf] %v1059
          %1124 = vst [vmem:[%s313 + $0x4c] sm:$0xf] %v1060
          %1125 = vst [vmem:[%s313 + $0x50] sm:$0xf] %v1061
          %1126 = vst [vmem:[%s313 + $0x54] sm:$0xf] %v1062
          %1127 = vst [vmem:[%s313 + $0x58] sm:$0xf] %v1063
          %1128 = vst [vmem:[%s313 + $0x5c] sm:$0xf] %v1064
          %1129 = vst [vmem:[%s313 + $0x60] sm:$0xf] %v1065
          %1130 = vst [vmem:[%s313 + $0x64] sm:$0xf] %v1066
          %1131 = vst [vmem:[%s313 + $0x68] sm:$0xf] %v1067
          %1132 = vst [vmem:[%s313 + $0x6c] sm:$0xf] %v1068
          %1133 = vst [vmem:[%s313 + $0x70] sm:$0xf] %v1069
          %1134 = vst [vmem:[%s313 + $0x74] sm:$0xf] %v1070
          %1135 = vst [vmem:[%s313 + $0x78] sm:$0xf] %v1071
          %1136 = vst [vmem:[%s313 + $0x7c] sm:$0xf] %v1072
          %v1137 = vld [vmem:[%s281] sm:$0xff]
          %v1138 = vld [vmem:[%s281 + $0x8] sm:$0xff]
          %v1139 = vld [vmem:[%s281 + $0x10] sm:$0xff]
          %v1140 = vld [vmem:[%s281 + $0x18] sm:$0xff]
          %v1141 = vld [vmem:[%s281 + $0x20] sm:$0xff]
          %v1142 = vld [vmem:[%s281 + $0x28] sm:$0xff]
          %v1143 = vld [vmem:[%s281 + $0x30] sm:$0xff]
          %v1144 = vld [vmem:[%s281 + $0x38] sm:$0xff]
          %v1145 = vld [vmem:[%s281 + $0x40] sm:$0xff]
          %v1146 = vld [vmem:[%s281 + $0x48] sm:$0xff]
          %v1147 = vld [vmem:[%s281 + $0x50] sm:$0xff]
          %v1148 = vld [vmem:[%s281 + $0x58] sm:$0xff]
          %v1149 = vld [vmem:[%s281 + $0x60] sm:$0xff]
          %v1150 = vld [vmem:[%s281 + $0x68] sm:$0xff]
          %v1151 = vld [vmem:[%s281 + $0x70] sm:$0xff]
          %v1152 = vld [vmem:[%s281 + $0x78] sm:$0xff]
          %v1153 = vld [vmem:[%s281 + $0x80] sm:$0xff]
          %v1154 = vld [vmem:[%s281 + $0x88] sm:$0xff]
          %v1155 = vld [vmem:[%s281 + $0x90] sm:$0xff]
          %v1156 = vld [vmem:[%s281 + $0x98] sm:$0xff]
          %v1157 = vld [vmem:[%s281 + $0xa0] sm:$0xff]
          %v1158 = vld [vmem:[%s281 + $0xa8] sm:$0xff]
          %v1159 = vld [vmem:[%s281 + $0xb0] sm:$0xff]
          %v1160 = vld [vmem:[%s281 + $0xb8] sm:$0xff]
          %v1161 = vld [vmem:[%s281 + $0xc0] sm:$0xff]
          %v1162 = vld [vmem:[%s281 + $0xc8] sm:$0xff]
          %v1163 = vld [vmem:[%s281 + $0xd0] sm:$0xff]
          %v1164 = vld [vmem:[%s281 + $0xd8] sm:$0xff]
          %v1165 = vld [vmem:[%s281 + $0xe0] sm:$0xff]
          %v1166 = vld [vmem:[%s281 + $0xe8] sm:$0xff]
          %v1167 = vld [vmem:[%s281 + $0xf0] sm:$0xff]
          %v1168 = vld [vmem:[%s281 + $0xf8] sm:$0xff]
          %v1169 = vmul.f32 %v945, 0.33333334
          %v1170 = vmul.f32 %v946, 0.33333334
          %v1171 = vmul.f32 %v947, 0.33333334
          %v1172 = vmul.f32 %v948, 0.33333334
          %v1173 = vmul.f32 %v949, 0.33333334
          %v1174 = vmul.f32 %v950, 0.33333334
          %v1175 = vmul.f32 %v951, 0.33333334
          %v1176 = vmul.f32 %v952, 0.33333334
          %v1177 = vmul.f32 %v953, 0.33333334
          %v1178 = vmul.f32 %v954, 0.33333334
          %v1179 = vmul.f32 %v955, 0.33333334
          %v1180 = vmul.f32 %v956, 0.33333334
          %v1181 = vmul.f32 %v957, 0.33333334
          %v1182 = vmul.f32 %v958, 0.33333334
          %v1183 = vmul.f32 %v959, 0.33333334
          %v1184 = vmul.f32 %v960, 0.33333334
          %v1185 = vmul.f32 %v961, 0.33333334
          %v1186 = vmul.f32 %v962, 0.33333334
          %v1187 = vmul.f32 %v963, 0.33333334
          %v1188 = vmul.f32 %v964, 0.33333334
          %v1189 = vmul.f32 %v965, 0.33333334
          %v1190 = vmul.f32 %v966, 0.33333334
          %v1191 = vmul.f32 %v967, 0.33333334
          %v1192 = vmul.f32 %v968, 0.33333334
          %v1193 = vmul.f32 %v969, 0.33333334
          %v1194 = vmul.f32 %v970, 0.33333334
          %v1195 = vmul.f32 %v971, 0.33333334
          %v1196 = vmul.f32 %v972, 0.33333334
          %v1197 = vmul.f32 %v973, 0.33333334
          %v1198 = vmul.f32 %v974, 0.33333334
          %v1199 = vmul.f32 %v975, 0.33333334
          %v1200 = vmul.f32 %v976, 0.33333334
          %v1201 = vadd.f32 %v1137, %v1169
          %v1202 = vadd.f32 %v1138, %v1170
          %v1203 = vadd.f32 %v1139, %v1171
          %v1204 = vadd.f32 %v1140, %v1172
          %v1205 = vadd.f32 %v1141, %v1173
          %v1206 = vadd.f32 %v1142, %v1174
          %v1207 = vadd.f32 %v1143, %v1175
          %v1208 = vadd.f32 %v1144, %v1176
          %v1209 = vadd.f32 %v1145, %v1177
          %v1210 = vadd.f32 %v1146, %v1178
          %v1211 = vadd.f32 %v1147, %v1179
          %v1212 = vadd.f32 %v1148, %v1180
          %v1213 = vadd.f32 %v1149, %v1181
          %v1214 = vadd.f32 %v1150, %v1182
          %v1215 = vadd.f32 %v1151, %v1183
          %v1216 = vadd.f32 %v1152, %v1184
          %v1217 = vadd.f32 %v1153, %v1185
          %v1218 = vadd.f32 %v1154, %v1186
          %v1219 = vadd.f32 %v1155, %v1187
          %v1220 = vadd.f32 %v1156, %v1188
          %v1221 = vadd.f32 %v1157, %v1189
          %v1222 = vadd.f32 %v1158, %v1190
          %v1223 = vadd.f32 %v1159, %v1191
          %v1224 = vadd.f32 %v1160, %v1192
          %v1225 = vadd.f32 %v1161, %v1193
          %v1226 = vadd.f32 %v1162, %v1194
          %v1227 = vadd.f32 %v1163, %v1195
          %v1228 = vadd.f32 %v1164, %v1196
          %v1229 = vadd.f32 %v1165, %v1197
          %v1230 = vadd.f32 %v1166, %v1198
          %v1231 = vadd.f32 %v1167, %v1199
          %v1232 = vadd.f32 %v1168, %v1200
          %1233 = vst [vmem:[%s320] sm:$0xff] %v1201
          %1234 = vst [vmem:[%s320 + $0x8] sm:$0xff] %v1202
          %1235 = vst [vmem:[%s320 + $0x10] sm:$0xff] %v1203
          %1236 = vst [vmem:[%s320 + $0x18] sm:$0xff] %v1204
          %1237 = vst [vmem:[%s320 + $0x20] sm:$0xff] %v1205
          %1238 = vst [vmem:[%s320 + $0x28] sm:$0xff] %v1206
          %1239 = vst [vmem:[%s320 + $0x30] sm:$0xff] %v1207
          %1240 = vst [vmem:[%s320 + $0x38] sm:$0xff] %v1208
          %1241 = vst [vmem:[%s320 + $0x40] sm:$0xff] %v1209
          %1242 = vst [vmem:[%s320 + $0x48] sm:$0xff] %v1210
          %1243 = vst [vmem:[%s320 + $0x50] sm:$0xff] %v1211
          %1244 = vst [vmem:[%s320 + $0x58] sm:$0xff] %v1212
          %1245 = vst [vmem:[%s320 + $0x60] sm:$0xff] %v1213
          %1246 = vst [vmem:[%s320 + $0x68] sm:$0xff] %v1214
          %1247 = vst [vmem:[%s320 + $0x70] sm:$0xff] %v1215
          %1248 = vst [vmem:[%s320 + $0x78] sm:$0xff] %v1216
          %1249 = vst [vmem:[%s320 + $0x80] sm:$0xff] %v1217
          %1250 = vst [vmem:[%s320 + $0x88] sm:$0xff] %v1218
          %1251 = vst [vmem:[%s320 + $0x90] sm:$0xff] %v1219
          %1252 = vst [vmem:[%s320 + $0x98] sm:$0xff] %v1220
          %1253 = vst [vmem:[%s320 + $0xa0] sm:$0xff] %v1221
          %1254 = vst [vmem:[%s320 + $0xa8] sm:$0xff] %v1222
          %1255 = vst [vmem:[%s320 + $0xb0] sm:$0xff] %v1223
          %1256 = vst [vmem:[%s320 + $0xb8] sm:$0xff] %v1224
          %1257 = vst [vmem:[%s320 + $0xc0] sm:$0xff] %v1225
          %1258 = vst [vmem:[%s320 + $0xc8] sm:$0xff] %v1226
          %1259 = vst [vmem:[%s320 + $0xd0] sm:$0xff] %v1227
          %1260 = vst [vmem:[%s320 + $0xd8] sm:$0xff] %v1228
          %1261 = vst [vmem:[%s320 + $0xe0] sm:$0xff] %v1229
          %1262 = vst [vmem:[%s320 + $0xe8] sm:$0xff] %v1230
          %1263 = vst [vmem:[%s320 + $0xf0] sm:$0xff] %v1231
          %1264 = vst [vmem:[%s320 + $0xf8] sm:$0xff] %v1232
        $region52: #{tpu_custom_call.1} parent=31 // pred_fallthru
          _
        %s1265 = sand.u32 %s128, 1
        %s1266 = scalar_lea.sflag [#allocation5], %s1265
        %s1267 = sand.u32 %s128, 1
        %s1268 = smul.addr %s1267, 128
        %s1269 = scalar_lea.vmem [#allocation9], %s1268
        %s1270 = sand.u32 %s154, 1
        %s1271 = scalar_lea.sflag [#allocation11], %s1270
        %s1272 = sand.u32 %s154, 1
        %s1273 = smul.addr %s1272, 256
        %s1274 = scalar_lea.vmem [#allocation10], %s1273
        // Predicated region
        $region53: #{tpu_custom_call.1} parent=31 // pred_check
          %p1275 = pneg %p138
        $region54: #{tpu_custom_call.1} parent=31 // pred_check_branch
          %1277 = sbr.rel (%p1275) target = $region56
        $region55: #{tpu_custom_call.1} parent=31 // pred_region
          %s1278 = smul.u32 32, %s32
          %s1280 = ssub.s32 2048, 2048
          %1281 = vsyncadd %s1266, %s1280
          %s1282 = smul.addr %s1278, 64
          %s1283 = scalar_lea.hbm %s3, %s1282
          %s1284 = sshll.u32 %s1269, 4
          %s1285 = int_to_ptr.vmem [resolvable:$true] %s1284
          %1290 = dma.vmem_to_hbm [thread:$0]  %s1285, 2048, %s1283, %s1266, 64, 64, 4
        $region56: #{tpu_custom_call.1} parent=31 // pred_fallthru
          _
        // Predicated region
        $region57: #{tpu_custom_call.1} parent=31 // pred_check
          %p1291 = pneg %p164
        $region58: #{tpu_custom_call.1} parent=31 // pred_check_branch
          %1293 = sbr.rel (%p1291) target = $region60
        $region59: #{tpu_custom_call.1} parent=31 // pred_region
          %s1294 = smul.u32 32, %s32
          %s1296 = ssub.s32 4096, 4096
          %1297 = vsyncadd %s1271, %s1296
          %s1298 = smul.addr %s1294, 128
          %s1299 = scalar_lea.hbm %s4, %s1298
          %s1300 = sshll.u32 %s1274, 4
          %s1301 = int_to_ptr.vmem [resolvable:$true] %s1300
          %1306 = dma.vmem_to_hbm [thread:$0]  %s1301, 4096, %s1299, %s1271, 128, 128, 8
        $region60: #{tpu_custom_call.1} parent=31 // pred_fallthru
          _
      $region32: #{tpu_custom_call.1} parent=5 // pred_fallthru
        _
      %p1307 = scmp.le.s32.totalorder 2, %s23
      // Predicated region
      $region61: #{tpu_custom_call.1} parent=5 // pred_check
        %p1308 = pneg %p1307
      $region62: #{tpu_custom_call.1} parent=5 // pred_check_branch
        %1310 = sbr.rel (%p1308) target = $region64
      $region63: #{tpu_custom_call.1} parent=5 // pred_region
        %s1311 = ssub.s32 %s23, 2
        // Predicated region
        $region65: #{tpu_custom_call.1} parent=63 // pred_check
          %p1312 = pneg %p144
        $region66: #{tpu_custom_call.1} parent=63 // pred_check_branch
          %1314 = sbr.rel (%p1312) target = $region68
        $region67: #{tpu_custom_call.1} parent=63 // pred_region
          %s1315 = sand.u32 %s129, 1
          %s1316 = scalar_lea.sflag [#allocation5], %s1315
          %s1317 = sand.u32 %s129, 1
          %s1318 = smul.addr %s1317, 128
          %s1319 = scalar_lea.vmem [#allocation9], %s1318
          %1320 = dma.done %s1316, 2048
        $region68: #{tpu_custom_call.1} parent=63 // pred_fallthru
          _
        // Predicated region
        $region69: #{tpu_custom_call.1} parent=63 // pred_check
          %p1321 = pneg %p170
        $region70: #{tpu_custom_call.1} parent=63 // pred_check_branch
          %1323 = sbr.rel (%p1321) target = $region72
        $region71: #{tpu_custom_call.1} parent=63 // pred_region
          %s1324 = sand.u32 %s155, 1
          %s1325 = scalar_lea.sflag [#allocation11], %s1324
          %s1326 = sand.u32 %s155, 1
          %s1327 = smul.addr %s1326, 256
          %s1328 = scalar_lea.vmem [#allocation10], %s1327
          %1329 = dma.done %s1325, 4096
        $region72: #{tpu_custom_call.1} parent=63 // pred_fallthru
          _
      $region64: #{tpu_custom_call.1} parent=5 // pred_fallthru
        _
    $region6: #{tpu_custom_call.1} parent=1 // loop_footer
      %s27 = sadd.s32 1, %s23
    $region7: #{tpu_custom_call.1} parent=1 // loop_footer_branch
      %22 = sbr.rel target = $region3
    $region8: #{tpu_custom_call.1} parent=1 // loop_exit
      _
    %1330 = vsyncpa [#allocation4], 1
    %s1331 = scalar_lea.sflag [#allocation4], 1
    %1332 = vsyncpa %s1331, 1
    %1333 = vsyncpa [#allocation7], 1
    %s1334 = scalar_lea.sflag [#allocation7], 1
    %1335 = vsyncpa %s1334, 1
    %1336 = vsyncpa [#allocation5], 1
    %s1337 = scalar_lea.sflag [#allocation5], 1
    %1338 = vsyncpa %s1337, 1
    %1339 = vsyncpa [#allocation11], 1
    %s1340 = scalar_lea.sflag [#allocation11], 1
    %1341 = vsyncpa %s1340, 1

</llo_original>
